<compile_context>
chip_gen: v7x
topology: tpu7x:2x2x1
jax: 0.10.0
libtpu: 0.0.40
codegen_flags: <defaults>
</compile_context>

<pallas_src>
import functools

import jax
import jax.numpy as jnp
from jax import lax
from jax.experimental import pallas as pl
from jax.experimental.pallas import tpu as pltpu

EPS = 1e-5
# bf16 MXU inputs with f32 accumulation (perf review); set to jnp.float32 for
# bit-closer parity with PyTorch's f32 matmul.
MATMUL_DTYPE = jnp.bfloat16
VMEM_LIMIT_BYTES = 48 * 1024 * 1024  # > default scoped limit, < v7x physical.


def _round_up(x, m):
    return (x + m - 1) // m * m


def fused_bn_add_relu_conv_kernel(
    x_ref, res_ref, scale1_ref, shift1_ref, w_ref,
    z_ref, psum_ref, psqsum_ref, *, m_true,
):
    """Per (TM, Cin) tile: folded-BN1 apply + residual add + ReLU + 1x1 conv
    (channel matmul on the MXU) + masked partial sums for BN2 statistics."""
    i = pl.program_id(0)
    tm = x_ref.shape[0]

    # BN1 folded into a per-channel affine: y = x * scale1 + shift1
    y = x_ref[...] * scale1_ref[...] + shift1_ref[...]
    y = jnp.maximum(y + res_ref[...], 0.0)

    # 1x1 conv == matmul over channels; bf16 inputs, f32 accumulation.
    z = jnp.dot(y.astype(w_ref.dtype), w_ref[...],
                preferred_element_type=jnp.float32)
    z_ref[...] = z

    # BN2 partial statistics; mask rows beyond the true M (padding).
    rows = i * tm + lax.broadcasted_iota(jnp.int32, (tm, 1), 0)
    zm = jnp.where(rows < m_true, z, 0.0)
    colsum = jnp.sum(zm, axis=0, keepdims=True)          # (1, Cout)
    colsqsum = jnp.sum(zm * zm, axis=0, keepdims=True)   # (1, Cout)
    # Replicate across the 8 sublanes of the (8, Cout) output block; the
    # factor of 8 is divided back out (exactly) in the wrapper.
    cout = z.shape[1]
    psum_ref[...] = jnp.broadcast_to(colsum, (8, cout))
    psqsum_ref[...] = jnp.broadcast_to(colsqsum, (8, cout))


def bn_apply_kernel(z_ref, scale_ref, shift_ref, o_ref):
    o_ref[...] = z_ref[...] * scale_ref[...] + shift_ref[...]


@functools.partial(jax.jit, static_argnames=("tm_target",))
def m_forward(x447, x440, gamma1, beta1, conv_w, gamma2, beta2, *, tm_target=512):
    """x447, x440: NCHW float32. conv_w: PyTorch layout (Cout, Cin, 1, 1)."""
    N, C, H, W = x447.shape
    Cout = conv_w.shape[0]
    M = N * H * W

    # NCHW -> NHWC -> (M, C): channels land on the lane dimension.
    # (Kept only because the module contract is NCHW; drop in an NHWC model.)
    xf = jnp.transpose(x447, (0, 2, 3, 1)).reshape(M, C)
    rf = jnp.transpose(x440, (0, 2, 3, 1)).reshape(M, C)
    w2d = conv_w.reshape(Cout, C).T.astype(MATMUL_DTYPE)  # (Cin, Cout), VMEM-resident

    # ---- Pass 1: BN1 batch statistics over M (single fused reduction). ----
    s1 = jnp.sum(xf, axis=0)
    s2 = jnp.sum(jnp.square(xf), axis=0)
    mean1 = s1 / M
    var1 = jnp.maximum(s2 / M - jnp.square(mean1), 0.0)          # biased (PyTorch norm path)
    inv1 = lax.rsqrt(var1 + EPS)
    scale1 = (gamma1 * inv1).reshape(1, C)
    shift1 = (beta1 - mean1 * gamma1 * inv1).reshape(1, C)

    # ---- Tiling over M (pad + mask; tm multiple of 8 sublanes). ----
    tm = min(tm_target, _round_up(M, 8))
    tm = _round_up(tm, 8)
    Mpad = _round_up(M, tm)
    num_tiles = Mpad // tm
    if Mpad != M:
        pad = Mpad - M
        xf = jnp.pad(xf, ((0, pad), (0, 0)))
        rf = jnp.pad(rf, ((0, pad), (0, 0)))

    kernel = functools.partial(fused_bn_add_relu_conv_kernel, m_true=M)

    # ---- Pass 2: fused BN1-apply + add + ReLU + 1x1 conv + BN2 partials. ----
    z, psum, psqsum = pl.pallas_call(
        kernel,
        grid=(num_tiles,),
        in_specs=[
            pl.BlockSpec((tm, C), lambda i: (i, 0)),       # x tile
            pl.BlockSpec((tm, C), lambda i: (i, 0)),       # residual tile
            pl.BlockSpec((1, C), lambda i: (0, 0)),        # scale1 (resident)
            pl.BlockSpec((1, C), lambda i: (0, 0)),        # shift1 (resident)
            pl.BlockSpec((C, Cout), lambda i: (0, 0)),     # weight (fetched once)
        ],
        out_specs=[
            pl.BlockSpec((tm, Cout), lambda i: (i, 0)),    # z tile
            pl.BlockSpec((8, Cout), lambda i: (i, 0)),     # per-tile sum(z)
            pl.BlockSpec((8, Cout), lambda i: (i, 0)),     # per-tile sum(z^2)
        ],
        out_shape=[
            jax.ShapeDtypeStruct((Mpad, Cout), jnp.float32),
            jax.ShapeDtypeStruct((8 * num_tiles, Cout), jnp.float32),
            jax.ShapeDtypeStruct((8 * num_tiles, Cout), jnp.float32),
        ],
        compiler_params=pltpu.CompilerParams(
            dimension_semantics=("parallel",),
            vmem_limit_bytes=VMEM_LIMIT_BYTES,
        ),
    )(xf, rf, scale1, shift1, w2d)

    # ---- Reduce BN2 statistics (tiny) and fold into an affine. ----
    sum_z = jnp.sum(psum, axis=0) / 8.0
    sum_z2 = jnp.sum(psqsum, axis=0) / 8.0
    mean2 = sum_z / M
    var2 = jnp.maximum(sum_z2 / M - jnp.square(mean2), 0.0)
    inv2 = lax.rsqrt(var2 + EPS)
    scale2 = (gamma2 * inv2).reshape(1, Cout)
    shift2 = (beta2 - mean2 * gamma2 * inv2).reshape(1, Cout)

    # ---- Pass 3: apply BN2 (tiled, memory-bound elementwise). ----
    out = pl.pallas_call(
        bn_apply_kernel,
        grid=(num_tiles,),
        in_specs=[
            pl.BlockSpec((tm, Cout), lambda i: (i, 0)),
            pl.BlockSpec((1, Cout), lambda i: (0, 0)),
            pl.BlockSpec((1, Cout), lambda i: (0, 0)),
        ],
        out_specs=pl.BlockSpec((tm, Cout), lambda i: (i, 0)),
        out_shape=jax.ShapeDtypeStruct((Mpad, Cout), jnp.float32),
        compiler_params=pltpu.CompilerParams(
            dimension_semantics=("parallel",),
            vmem_limit_bytes=VMEM_LIMIT_BYTES,
        ),
    )(z, scale2, shift2)

    out = out[:M]
    return jnp.transpose(out.reshape(N, H, W, Cout), (0, 3, 1, 2))


def reference_forward(x447, x440, gamma1, beta1, conv_w, gamma2, beta2):
    """Pure-jnp reference (same bf16 matmul quantization as the kernel)."""
    N, C, H, W = x447.shape
    Cout = conv_w.shape[0]
    xf = jnp.transpose(x447, (0, 2, 3, 1)).reshape(-1, C)
    rf = jnp.transpose(x440, (0, 2, 3, 1)).reshape(-1, C)
    mean1 = jnp.mean(xf, axis=0)
    var1 = jnp.var(xf, axis=0)
    y = (xf - mean1) * lax.rsqrt(var1 + EPS) * gamma1 + beta1
    y = jnp.maximum(y + rf, 0.0)
    w2d = conv_w.reshape(Cout, C).T
    z = jnp.dot(y.astype(MATMUL_DTYPE), w2d.astype(MATMUL_DTYPE),
                preferred_element_type=jnp.float32)
    mean2 = jnp.mean(z, axis=0)
    var2 = jnp.var(z, axis=0)
    o = (z - mean2) * lax.rsqrt(var2 + EPS) * gamma2 + beta2
    return jnp.transpose(o.reshape(N, H, W, Cout), (0, 3, 1, 2))


if __name__ == "__main__":
    # Small shapes consistent with the module (scaled down from [1,1024,14,14] -> 256).
    # H=W=7 gives M=98 (not a multiple of the tile) and tm_target=32 gives a
    # 4-step grid, so padding/masking and the multi-tile path are exercised.
    N, Cin, H, W = 2, 32, 7, 7
    Cout = 16

    key = jax.random.PRNGKey(0)
    k1, k2, k3, k4, k5, k6, k7 = jax.random.split(key, 7)

    x447 = jax.random.normal(k1, (N, Cin, H, W), dtype=jnp.float32)
    x440 = jax.random.normal(k2, (N, Cin, H, W), dtype=jnp.float32)

    gamma1 = 1.0 + 0.1 * jax.random.normal(k3, (Cin,), dtype=jnp.float32)
    beta1 = 0.1 * jax.random.normal(k4, (Cin,), dtype=jnp.float32)
    conv_w = jax.random.normal(k5, (Cout, Cin, 1, 1), dtype=jnp.float32) * 0.05
    gamma2 = 1.0 + 0.1 * jax.random.normal(k6, (Cout,), dtype=jnp.float32)
    beta2 = 0.1 * jax.random.normal(k7, (Cout,), dtype=jnp.float32)

    out = m_forward(x447, x440, gamma1, beta1, conv_w, gamma2, beta2,
                    tm_target=32)  # production default: tm_target=512
    out = jax.block_until_ready(out)

    assert out.shape == (N, Cout, H, W), out.shape
    assert bool(jnp.all(jnp.isfinite(out)))

    ref = jax.block_until_ready(
        reference_forward(x447, x440, gamma1, beta1, conv_w, gamma2, beta2))
    max_err = float(jnp.max(jnp.abs(out - ref)))
    assert max_err < 5e-3, f"max abs err vs reference = {max_err}"

    print("KERNEL_OK")
</pallas_src>

<mosaic_0001>
module attributes {stable_mosaic.version = 11 : i64} {
  func.func @fused_bn_add_relu_conv_kernel(%arg0: i32, %arg1: memref<32x32xf32, #tpu.memory_space<vmem>>, %arg2: memref<32x32xf32, #tpu.memory_space<vmem>>, %arg3: memref<1x32xf32, #tpu.memory_space<vmem>>, %arg4: memref<1x32xf32, #tpu.memory_space<vmem>>, %arg5: memref<32x16xbf16, #tpu.memory_space<vmem>>, %arg6: memref<32x16xf32, #tpu.memory_space<vmem>>, %arg7: memref<8x16xf32, #tpu.memory_space<vmem>>, %arg8: memref<8x16xf32, #tpu.memory_space<vmem>>) attributes {dimension_semantics = [#tpu.dimension_semantics<parallel>], iteration_bounds = array<i64: 4>, scalar_prefetch = 0 : i64, scratch_operands = 0 : i64, tpu.core_type = #tpu.core_type<tc>, window_params = [{transform_indices = @transform_0, window_bounds = array<i64: 32, 32>}, {transform_indices = @transform_1, window_bounds = array<i64: 32, 32>}, {pipeline_mode = #tpu.pipeline_mode<synchronous>, transform_indices = @transform_2, window_bounds = array<i64: 1, 32>}, {pipeline_mode = #tpu.pipeline_mode<synchronous>, transform_indices = @transform_3, window_bounds = array<i64: 1, 32>}, {pipeline_mode = #tpu.pipeline_mode<synchronous>, transform_indices = @transform_4, window_bounds = array<i64: 32, 16>}, {transform_indices = @transform_5, window_bounds = array<i64: 32, 16>}, {transform_indices = @transform_6, window_bounds = array<i64: 8, 16>}, {transform_indices = @transform_7, window_bounds = array<i64: 8, 16>}]} {
    %c0 = arith.constant 0 : index
    %c0_0 = arith.constant 0 : index
    %0 = vector.load %arg1[%c0, %c0_0] : memref<32x32xf32, #tpu.memory_space<vmem>>, vector<32x32xf32>
    %c0_1 = arith.constant 0 : index
    %c0_2 = arith.constant 0 : index
    %1 = vector.load %arg3[%c0_1, %c0_2] : memref<1x32xf32, #tpu.memory_space<vmem>>, vector<1x32xf32>
    %2 = vector.broadcast %1 : vector<1x32xf32> to vector<32x32xf32>
    %3 = arith.mulf %0, %2 : vector<32x32xf32>
    %c0_3 = arith.constant 0 : index
    %c0_4 = arith.constant 0 : index
    %4 = vector.load %arg4[%c0_3, %c0_4] : memref<1x32xf32, #tpu.memory_space<vmem>>, vector<1x32xf32>
    %5 = vector.broadcast %4 : vector<1x32xf32> to vector<32x32xf32>
    %6 = arith.addf %3, %5 : vector<32x32xf32>
    %c0_5 = arith.constant 0 : index
    %c0_6 = arith.constant 0 : index
    %7 = vector.load %arg2[%c0_5, %c0_6] : memref<32x32xf32, #tpu.memory_space<vmem>>, vector<32x32xf32>
    %8 = arith.addf %6, %7 : vector<32x32xf32>
    %cst = arith.constant 0.000000e+00 : f32
    %9 = vector.broadcast %cst : f32 to vector<32x32xf32>
    %10 = arith.maximumf %8, %9 : vector<32x32xf32>
    %11 = arith.truncf %10 : vector<32x32xf32> to vector<32x32xbf16>
    %c0_7 = arith.constant 0 : index
    %c0_8 = arith.constant 0 : index
    %12 = vector.load %arg5[%c0_7, %c0_8] : memref<32x16xbf16, #tpu.memory_space<vmem>>, vector<32x16xbf16>
    %cst_9 = arith.constant dense<0.000000e+00> : vector<32x16xf32>
    %13 = tpu.matmul %11, %12, %cst_9 {dimension_numbers = #tpu.dot_dimension_numbers<[1], [0], [0], [1], [0, 0, 1, 1], [], []>} : vector<32x32xbf16>, vector<32x16xbf16>, vector<32x16xf32> -> vector<32x16xf32>
    %c0_10 = arith.constant 0 : index
    %c0_11 = arith.constant 0 : index
    %14 = vector.load %arg6[%c0_10, %c0_11] : memref<32x16xf32, #tpu.memory_space<vmem>>, vector<32x16xf32>
    tpu.vector_store %arg6[%c0_10, %c0_11], %13 {strides = array<i32>} : memref<32x16xf32, #tpu.memory_space<vmem>>, vector<32x16xf32>,
    %c32_i32 = arith.constant 32 : i32
    %15 = arith.muli %arg0, %c32_i32 : i32
    %16 = tpu.iota {dimensions = array<i32: 0>} : vector<32x1xi32>
    %17 = vector.broadcast %15 : i32 to vector<32x1xi32>
    %18 = arith.addi %17, %16 : vector<32x1xi32>
    %c98_i32 = arith.constant 98 : i32
    %19 = vector.broadcast %c98_i32 : i32 to vector<32x1xi32>
    %20 = arith.cmpi slt, %18, %19 : vector<32x1xi32>
    %cst_12 = arith.constant 0.000000e+00 : f32
    %21 = vector.shape_cast %20 : vector<32x1xi1> to vector<32x1xi1>
    %22 = vector.broadcast %21 : vector<32x1xi1> to vector<32x16xi1>
    %23 = vector.broadcast %cst_12 : f32 to vector<32x16xf32>
    %24 = arith.select %22, %13, %23 : vector<32x16xi1>, vector<32x16xf32>
    %cst_13 = arith.constant dense<0.000000e+00> : vector<16xf32>
    %25 = vector.multi_reduction <add>, %24, %cst_13 [0] : vector<32x16xf32> to vector<16xf32>
    %26 = vector.shape_cast %25 : vector<16xf32> to vector<1x16xf32>
    %27 = arith.mulf %24, %24 : vector<32x16xf32>
    %cst_14 = arith.constant dense<0.000000e+00> : vector<16xf32>
    %28 = vector.multi_reduction <add>, %27, %cst_14 [0] : vector<32x16xf32> to vector<16xf32>
    %29 = vector.shape_cast %28 : vector<16xf32> to vector<1x16xf32>
    %30 = vector.shape_cast %26 : vector<1x16xf32> to vector<1x16xf32>
    %31 = vector.broadcast %30 : vector<1x16xf32> to vector<8x16xf32>
    %c0_15 = arith.constant 0 : index
    %c0_16 = arith.constant 0 : index
    %32 = vector.load %arg7[%c0_15, %c0_16] : memref<8x16xf32, #tpu.memory_space<vmem>>, vector<8x16xf32>
    tpu.vector_store %arg7[%c0_15, %c0_16], %31 {strides = array<i32>} : memref<8x16xf32, #tpu.memory_space<vmem>>, vector<8x16xf32>,
    %33 = vector.shape_cast %29 : vector<1x16xf32> to vector<1x16xf32>
    %34 = vector.broadcast %33 : vector<1x16xf32> to vector<8x16xf32>
    %c0_17 = arith.constant 0 : index
    %c0_18 = arith.constant 0 : index
    %35 = vector.load %arg8[%c0_17, %c0_18] : memref<8x16xf32, #tpu.memory_space<vmem>>, vector<8x16xf32>
    tpu.vector_store %arg8[%c0_17, %c0_18], %34 {strides = array<i32>} : memref<8x16xf32, #tpu.memory_space<vmem>>, vector<8x16xf32>,
    return
  }
  func.func @transform_0(%arg0: i32) -> (i32, i32) {
    %c0_i32 = arith.constant 0 : i32
    %c0_i32_0 = arith.constant 0 : i32
    return %arg0, %c0_i32 : i32, i32
  }
  func.func @transform_1(%arg0: i32) -> (i32, i32) {
    %c0_i32 = arith.constant 0 : i32
    %c0_i32_0 = arith.constant 0 : i32
    return %arg0, %c0_i32 : i32, i32
  }
  func.func @transform_2(%arg0: i32) -> (i32, i32) {
    %c0_i32 = arith.constant 0 : i32
    %c0_i32_0 = arith.constant 0 : i32
    %c0_i32_1 = arith.constant 0 : i32
    return %c0_i32, %c0_i32_0 : i32, i32
  }
  func.func @transform_3(%arg0: i32) -> (i32, i32) {
    %c0_i32 = arith.constant 0 : i32
    %c0_i32_0 = arith.constant 0 : i32
    %c0_i32_1 = arith.constant 0 : i32
    return %c0_i32, %c0_i32_0 : i32, i32
  }
  func.func @transform_4(%arg0: i32) -> (i32, i32) {
    %c0_i32 = arith.constant 0 : i32
    %c0_i32_0 = arith.constant 0 : i32
    %c0_i32_1 = arith.constant 0 : i32
    return %c0_i32, %c0_i32_0 : i32, i32
  }
  func.func @transform_5(%arg0: i32) -> (i32, i32) {
    %c0_i32 = arith.constant 0 : i32
    %c0_i32_0 = arith.constant 0 : i32
    return %arg0, %c0_i32 : i32, i32
  }
  func.func @transform_6(%arg0: i32) -> (i32, i32) {
    %c0_i32 = arith.constant 0 : i32
    %c0_i32_0 = arith.constant 0 : i32
    return %arg0, %c0_i32 : i32, i32
  }
  func.func @transform_7(%arg0: i32) -> (i32, i32) {
    %c0_i32 = arith.constant 0 : i32
    %c0_i32_0 = arith.constant 0 : i32
    return %arg0, %c0_i32 : i32, i32
  }
}

module attributes {stable_mosaic.version = 11 : i64} {
  func.func @bn_apply_kernel(%arg0: i32, %arg1: memref<32x16xf32, #tpu.memory_space<vmem>>, %arg2: memref<1x16xf32, #tpu.memory_space<vmem>>, %arg3: memref<1x16xf32, #tpu.memory_space<vmem>>, %arg4: memref<32x16xf32, #tpu.memory_space<vmem>>) attributes {dimension_semantics = [#tpu.dimension_semantics<parallel>], iteration_bounds = array<i64: 4>, scalar_prefetch = 0 : i64, scratch_operands = 0 : i64, tpu.core_type = #tpu.core_type<tc>, window_params = [{transform_indices = @transform_0, window_bounds = array<i64: 32, 16>}, {pipeline_mode = #tpu.pipeline_mode<synchronous>, transform_indices = @transform_1, window_bounds = array<i64: 1, 16>}, {pipeline_mode = #tpu.pipeline_mode<synchronous>, transform_indices = @transform_2, window_bounds = array<i64: 1, 16>}, {transform_indices = @transform_3, window_bounds = array<i64: 32, 16>}]} {
    %c0 = arith.constant 0 : index
    %c0_0 = arith.constant 0 : index
    %0 = vector.load %arg1[%c0, %c0_0] : memref<32x16xf32, #tpu.memory_space<vmem>>, vector<32x16xf32>
    %c0_1 = arith.constant 0 : index
    %c0_2 = arith.constant 0 : index
    %1 = vector.load %arg2[%c0_1, %c0_2] : memref<1x16xf32, #tpu.memory_space<vmem>>, vector<1x16xf32>
    %2 = vector.broadcast %1 : vector<1x16xf32> to vector<32x16xf32>
    %3 = arith.mulf %0, %2 : vector<32x16xf32>
    %c0_3 = arith.constant 0 : index
    %c0_4 = arith.constant 0 : index
    %4 = vector.load %arg3[%c0_3, %c0_4] : memref<1x16xf32, #tpu.memory_space<vmem>>, vector<1x16xf32>
    %5 = vector.broadcast %4 : vector<1x16xf32> to vector<32x16xf32>
    %6 = arith.addf %3, %5 : vector<32x16xf32>
    %c0_5 = arith.constant 0 : index
    %c0_6 = arith.constant 0 : index
    %7 = vector.load %arg4[%c0_5, %c0_6] : memref<32x16xf32, #tpu.memory_space<vmem>>, vector<32x16xf32>
    tpu.vector_store %arg4[%c0_5, %c0_6], %6 {strides = array<i32>} : memref<32x16xf32, #tpu.memory_space<vmem>>, vector<32x16xf32>,
    return
  }
  func.func @transform_0(%arg0: i32) -> (i32, i32) {
    %c0_i32 = arith.constant 0 : i32
    %c0_i32_0 = arith.constant 0 : i32
    return %arg0, %c0_i32 : i32, i32
  }
  func.func @transform_1(%arg0: i32) -> (i32, i32) {
    %c0_i32 = arith.constant 0 : i32
    %c0_i32_0 = arith.constant 0 : i32
    %c0_i32_1 = arith.constant 0 : i32
    return %c0_i32, %c0_i32_0 : i32, i32
  }
  func.func @transform_2(%arg0: i32) -> (i32, i32) {
    %c0_i32 = arith.constant 0 : i32
    %c0_i32_0 = arith.constant 0 : i32
    %c0_i32_1 = arith.constant 0 : i32
    return %c0_i32, %c0_i32_0 : i32, i32
  }
  func.func @transform_3(%arg0: i32) -> (i32, i32) {
    %c0_i32 = arith.constant 0 : i32
    %c0_i32_0 = arith.constant 0 : i32
    return %arg0, %c0_i32 : i32, i32
  }
}

</mosaic_0001>

<llo_original>
// kernel: m_forward.3
$region0: #{m_forward.3}
  #allocation0 [shape = 'u32[]', space=smem, size = 0x4, offset = 0x4, fixed_abs, tag = 'smem constant byte address 0x4 - core index']
  #allocation1 [shape = 'u32[144,128]{1,0:T(1,128)}', space=vmem, size = 0x12000, scoped, tag = 'internal scratch']
  %s0 = inlined_call_operand.vmem [shape: f32[128,16], index: 0, kind: input, shape index: {}]
  %s1 = inlined_call_operand.vmem [shape: f32[1,16], index: 1, kind: input, shape index: {}]
  %s2 = inlined_call_operand.vmem [shape: f32[1,16], index: 2, kind: input, shape index: {}]
  %s3 = inlined_call_operand.vmem [shape: f32[128,16], index: 3, kind: output, shape index: {}]
  %s4 = sld [smem:[#allocation0]]
  $region45: #{m_forward.3} parent=0
    _
  %s6 = ssub.s32 1, %s4
  %s7 = scalar_select 0, %s6, %s4
  loop: start=0, step=1, limit=6
  $region2: #{m_forward.3} parent=0 // loop_pre_header
    _
  $region3: #{m_forward.3} parent=0 // loop_header
    %s9 = sphi 0, %s13
    %p10 = scmp.ge.s32.totalorder %s9, 6
    %s19 = sphi 0, %s21
    %s22 = sphi 0, %s19
    %s23 = sphi 0, %s22
    %s39 = sphi 0, %s23
    %s43 = sphi 0, %s43
    %s45 = sphi 0, %s43
    %s46 = sphi 0, %s45
    %s60 = sphi 0, %s46
    %s64 = sphi 0, %s64
    %s66 = sphi 0, %s64
    %s67 = sphi 0, %s66
    %s81 = sphi 0, %s67
    %s87 = sphi 0, %s89
    %s90 = sphi 0, %s87
    %s91 = sphi 0, %s90
    %s107 = sphi 0, %s91
  $region4: #{m_forward.3} parent=0 // loop_header_branch
    %12 = sbr.rel (%p10) target = $region8
  $region5: #{m_forward.3} parent=0 // loop_body
    %s14 = ssub.s32 %s9, 1
    %s15 = ssub.s32 %s9, 2
    %s16 = sadd.s32 %s9, 1
    %s17 = ssub.s32 %s9, %s16
    %p18 = scmp.eq.s32.totalorder %s17, 0
    %s20 = sadd.s32 %s19, 1
    %s21 = scalar_select %p18, %s19, %s20
    %p24 = pneg %p18
    %p25 = scmp.eq.s32.totalorder %s9, 3
    %p26 = por %p24, %p25
    %p27 = scmp.ne.s32.totalorder %s19, %s22
    %p28 = scmp.eq.s32.totalorder %s9, 0
    %p29 = por %p27, %p28
    %p30 = scmp.ne.s32.totalorder %s19, %s22
    %p31 = scmp.eq.s32.totalorder %s14, 3
    %p32 = por %p30, %p31
    %p33 = scmp.ne.s32.totalorder %s22, %s23
    %p34 = scmp.eq.s32.totalorder %s14, 0
    %p35 = por %p33, %p34
    %p36 = scmp.ne.s32.totalorder %s22, %s23
    %p37 = scmp.eq.s32.totalorder %s15, 3
    %p38 = por %p36, %p37
    %p40 = scmp.ne.s32.totalorder %s23, %s39
    %p41 = scmp.eq.s32.totalorder %s15, 0
    %p42 = por %p40, %p41
    %s44 = sadd.s32 %s43, 1
    %p47 = scmp.eq.s32.totalorder %s9, 3
    %p48 = scmp.ne.s32.totalorder %s43, %s45
    %p49 = scmp.eq.s32.totalorder %s9, 0
    %p50 = por %p48, %p49
    %p51 = scmp.ne.s32.totalorder %s43, %s45
    %p52 = scmp.eq.s32.totalorder %s14, 3
    %p53 = por %p51, %p52
    %p54 = scmp.ne.s32.totalorder %s45, %s46
    %p55 = scmp.eq.s32.totalorder %s14, 0
    %p56 = por %p54, %p55
    %p57 = scmp.ne.s32.totalorder %s45, %s46
    %p58 = scmp.eq.s32.totalorder %s15, 3
    %p59 = por %p57, %p58
    %p61 = scmp.ne.s32.totalorder %s46, %s60
    %p62 = scmp.eq.s32.totalorder %s15, 0
    %p63 = por %p61, %p62
    %s65 = sadd.s32 %s64, 1
    %p68 = scmp.eq.s32.totalorder %s9, 3
    %p69 = scmp.ne.s32.totalorder %s64, %s66
    %p70 = scmp.eq.s32.totalorder %s9, 0
    %p71 = por %p69, %p70
    %p72 = scmp.ne.s32.totalorder %s64, %s66
    %p73 = scmp.eq.s32.totalorder %s14, 3
    %p74 = por %p72, %p73
    %p75 = scmp.ne.s32.totalorder %s66, %s67
    %p76 = scmp.eq.s32.totalorder %s14, 0
    %p77 = por %p75, %p76
    %p78 = scmp.ne.s32.totalorder %s66, %s67
    %p79 = scmp.eq.s32.totalorder %s15, 3
    %p80 = por %p78, %p79
    %p82 = scmp.ne.s32.totalorder %s67, %s81
    %p83 = scmp.eq.s32.totalorder %s15, 0
    %p84 = por %p82, %p83
    %s85 = ssub.s32 %s9, %s16
    %p86 = scmp.eq.s32.totalorder %s85, 0
    %s88 = sadd.s32 %s87, 1
    %s89 = scalar_select %p86, %s87, %s88
    %p92 = pneg %p86
    %p93 = scmp.eq.s32.totalorder %s9, 3
    %p94 = por %p92, %p93
    %p95 = scmp.ne.s32.totalorder %s87, %s90
    %p96 = scmp.eq.s32.totalorder %s9, 0
    %p97 = por %p95, %p96
    %p98 = scmp.ne.s32.totalorder %s87, %s90
    %p99 = scmp.eq.s32.totalorder %s14, 3
    %p100 = por %p98, %p99
    %p101 = scmp.ne.s32.totalorder %s90, %s91
    %p102 = scmp.eq.s32.totalorder %s14, 0
    %p103 = por %p101, %p102
    %p104 = scmp.ne.s32.totalorder %s90, %s91
    %p105 = scmp.eq.s32.totalorder %s15, 3
    %p106 = por %p104, %p105
    %p108 = scmp.ne.s32.totalorder %s91, %s107
    %p109 = scmp.eq.s32.totalorder %s15, 0
    %p110 = por %p108, %p109
    %p111 = scmp.le.s32.totalorder 1, %s9
    %p112 = scmp.lt.s32.totalorder %s9, 5
    %p113 = pnand %p111, %p112
    %p114 = pneg %p113
    // Predicated region
    $region9: #{m_forward.3} parent=5 // pred_check
      _
    $region10: #{m_forward.3} parent=5 // pred_check_branch
      %116 = sbr.rel (%p113) target = $region12
    $region11: #{m_forward.3} parent=5 // pred_region
      %s117 = ssub.s32 %s9, 1
      // Predicated region
      $region13: #{m_forward.3} parent=11 // pred_check
        %p118 = pneg %p56
      $region14: #{m_forward.3} parent=11 // pred_check_branch
        %120 = sbr.rel (%p118) target = $region16
      $region15: #{m_forward.3} parent=11 // pred_region
        _
      $region16: #{m_forward.3} parent=11 // pred_fallthru
        _
      // Predicated region
      $region17: #{m_forward.3} parent=11 // pred_check
        %p121 = pneg %p77
      $region18: #{m_forward.3} parent=11 // pred_check_branch
        %123 = sbr.rel (%p121) target = $region20
      $region19: #{m_forward.3} parent=11 // pred_region
        _
      $region20: #{m_forward.3} parent=11 // pred_fallthru
        _
    $region12: #{m_forward.3} parent=5 // pred_fallthru
      _
    %p124 = scmp.lt.s32.totalorder %s9, 4
    // Predicated region
    $region21: #{m_forward.3} parent=5 // pred_check
      %p125 = pneg %p124
    $region22: #{m_forward.3} parent=5 // pred_check_branch
      %127 = sbr.rel (%p125) target = $region24
    $region23: #{m_forward.3} parent=5 // pred_region
      // Predicated region
      $region25: #{m_forward.3} parent=23 // pred_check
        %p128 = pneg %p29
      $region26: #{m_forward.3} parent=23 // pred_check_branch
        %130 = sbr.rel (%p128) target = $region28
      $region27: #{m_forward.3} parent=23 // pred_region
        %s131 = smul.u32 4, %s9
        %p132 = scmp.lt.s32.totalorder %s131, 15
        %s133 = scalar_select %p132, %s131, 15
        %s134 = smul.addr %s133, 8
        %s135 = scalar_lea.vmem %s0, %s134
        %s136 = smul.u32 4, %s9
      $region28: #{m_forward.3} parent=23 // pred_fallthru
        _
    $region24: #{m_forward.3} parent=5 // pred_fallthru
      _
    %p137 = scmp.le.s32.totalorder 1, %s9
    %p138 = scmp.lt.s32.totalorder %s9, 5
    %p139 = pnand %p137, %p138
    %p140 = pneg %p139
    // Predicated region
    $region29: #{m_forward.3} parent=5 // pred_check
      _
    $region30: #{m_forward.3} parent=5 // pred_check_branch
      %142 = sbr.rel (%p139) target = $region32
    $region31: #{m_forward.3} parent=5 // pred_region
      %s143 = ssub.s32 %s9, 1
      %s144 = smul.u32 4, %s14
      %p145 = scmp.lt.s32.totalorder %s144, 15
      %s146 = scalar_select %p145, %s144, 15
      %s147 = smul.addr %s146, 8
      %s148 = scalar_lea.vmem %s0, %s147
      %p149 = pneg %p35
      %p150 = pneg %p32
      %p151 = pneg %p56
      %p152 = pneg %p53
      %p153 = pneg %p77
      %p154 = pneg %p74
      %p155 = pneg %p103
      %p156 = pneg %p100
      %s157 = smul.u32 4, %s14
      %p158 = scmp.lt.s32.totalorder %s157, 15
      %s159 = scalar_select %p158, %s157, 15
      %s160 = smul.addr %s159, 8
      %s161 = scalar_lea.vmem %s3, %s160
      %s162 = smul.u32 4, %s14
      %p163 = scmp.lt.s32.totalorder %s162, 15
      %s164 = scalar_select %p163, %s162, 15
      %s165 = smul.addr %s164, 8
      %s166 = scalar_lea.vmem %s0, %s165
      %s167 = smul.u32 4, %s14
      %s168 = smul.u32 4, %s14
      %p169 = scmp.lt.s32.totalorder %s168, 15
      %s170 = scalar_select %p169, %s168, 15
      %s171 = smul.addr %s170, 8
      %s172 = scalar_lea.vmem %s3, %s171
      %s173 = smul.u32 4, %s14
      %v174 = vld [vmem:[%s166] sm:$0xff]
      %v175 = vld [vmem:[%s166 + $0x8] sm:$0xff]
      %v176 = vld [vmem:[%s166 + $0x10] sm:$0xff]
      %v177 = vld [vmem:[%s166 + $0x18] sm:$0xff]
      %v178 = vld [vmem:[%s1] sm:$0x1]
      %v180 = vlaneseq
      %v181 = vshrl.u32 %v180, 7
      %v182 = vsub.s32 0, %v181
      %v183 = vrot.slane %v178, %v182
      %v185 = vmul.f32 %v174, %v183
      %v186 = vmul.f32 %v175, %v183
      %v187 = vmul.f32 %v176, %v183
      %v188 = vmul.f32 %v177, %v183
      %v189 = vld [vmem:[%s2] sm:$0x1]
      %v191 = vlaneseq
      %v192 = vshrl.u32 %v191, 7
      %v193 = vsub.s32 0, %v192
      %v194 = vrot.slane %v189, %v193
      %v196 = vadd.f32 %v185, %v194
      %v197 = vadd.f32 %v186, %v194
      %v198 = vadd.f32 %v187, %v194
      %v199 = vadd.f32 %v188, %v194
      %vm200 = vcmask 130048
      %201 = vst.msk [vmem:[%s172] sm:$0xff] %vm200, %v196
      %202 = vst.msk [vmem:[%s172 + $0x8] sm:$0xff] %vm200, %v197
      %203 = vst.msk [vmem:[%s172 + $0x10] sm:$0xff] %vm200, %v198
      %204 = vst.msk [vmem:[%s172 + $0x18] sm:$0xff] %vm200, %v199
      %s205 = smul.u32 4, %s14
      %p206 = scmp.lt.s32.totalorder %s205, 15
      %s207 = scalar_select %p206, %s205, 15
      %s208 = smul.addr %s207, 8
      %s209 = scalar_lea.vmem %s3, %s208
      // Predicated region
      $region33: #{m_forward.3} parent=31 // pred_check
        %p210 = pneg %p100
      $region34: #{m_forward.3} parent=31 // pred_check_branch
        %212 = sbr.rel (%p210) target = $region36
      $region35: #{m_forward.3} parent=31 // pred_region
        %s213 = smul.u32 4, %s14
      $region36: #{m_forward.3} parent=31 // pred_fallthru
        _
    $region32: #{m_forward.3} parent=5 // pred_fallthru
      _
    %p214 = scmp.le.s32.totalorder 2, %s9
    // Predicated region
    $region37: #{m_forward.3} parent=5 // pred_check
      %p215 = pneg %p214
    $region38: #{m_forward.3} parent=5 // pred_check_branch
      %217 = sbr.rel (%p215) target = $region40
    $region39: #{m_forward.3} parent=5 // pred_region
      %s218 = ssub.s32 %s9, 2
      // Predicated region
      $region41: #{m_forward.3} parent=39 // pred_check
        %p219 = pneg %p106
      $region42: #{m_forward.3} parent=39 // pred_check_branch
        %221 = sbr.rel (%p219) target = $region44
      $region43: #{m_forward.3} parent=39 // pred_region
        %s222 = smul.u32 4, %s15
        %p223 = scmp.lt.s32.totalorder %s222, 15
        %s224 = scalar_select %p223, %s222, 15
        %s225 = smul.addr %s224, 8
        %s226 = scalar_lea.vmem %s3, %s225
      $region44: #{m_forward.3} parent=39 // pred_fallthru
        _
    $region40: #{m_forward.3} parent=5 // pred_fallthru
      _
  $region6: #{m_forward.3} parent=0 // loop_footer
    %s13 = sadd.s32 1, %s9
  $region7: #{m_forward.3} parent=0 // loop_footer_branch
    %8 = sbr.rel target = $region3
  $region8: #{m_forward.3} parent=0 // loop_exit
    _

// kernel: m_forward.2
$region0: #{m_forward.2}
  #allocation0 [shape = 'u32[]', space=smem, size = 0x4, offset = 0x4, fixed_abs, tag = 'smem constant byte address 0x4 - core index']
  #allocation1 [shape = 'u32[144,128]{1,0:T(1,128)}', space=vmem, size = 0x12000, scoped, tag = 'internal scratch']
  %s0 = inlined_call_operand.vmem [shape: f32[128,32], index: 0, kind: input, shape index: {}]
  %s1 = inlined_call_operand.vmem [shape: f32[128,32], index: 1, kind: input, shape index: {}]
  %s2 = inlined_call_operand.vmem [shape: f32[1,32], index: 2, kind: input, shape index: {}]
  %s3 = inlined_call_operand.vmem [shape: f32[1,32], index: 3, kind: input, shape index: {}]
  %s4 = inlined_call_operand.vmem [shape: bf16[32,16], index: 4, kind: input, shape index: {}]
  %s5 = inlined_call_operand.vmem [shape: f32[128,16], index: 5, kind: output, shape index: {0}]
  %s6 = inlined_call_operand.vmem [shape: f32[32,16], index: 6, kind: output, shape index: {1}]
  %s7 = inlined_call_operand.vmem [shape: f32[32,16], index: 7, kind: output, shape index: {2}]
  %8 = xla_tuple %s5, %s6, %s7
  %s9 = sld [smem:[#allocation0]]
  $region69: #{m_forward.2} parent=0
    _
  %s11 = ssub.s32 1, %s9
  %s12 = scalar_select 0, %s11, %s9
  loop: start=0, step=1, limit=6
  $region2: #{m_forward.2} parent=0 // loop_pre_header
    _
  $region3: #{m_forward.2} parent=0 // loop_header
    %s14 = sphi 0, %s18
    %p15 = scmp.ge.s32.totalorder %s14, 6
    %s24 = sphi 0, %s26
    %s27 = sphi 0, %s24
    %s28 = sphi 0, %s27
    %s44 = sphi 0, %s28
    %s50 = sphi 0, %s52
    %s53 = sphi 0, %s50
    %s54 = sphi 0, %s53
    %s70 = sphi 0, %s54
    %s74 = sphi 0, %s74
    %s76 = sphi 0, %s74
    %s77 = sphi 0, %s76
    %s91 = sphi 0, %s77
    %s95 = sphi 0, %s95
    %s97 = sphi 0, %s95
    %s98 = sphi 0, %s97
    %s112 = sphi 0, %s98
    %s116 = sphi 0, %s116
    %s118 = sphi 0, %s116
    %s119 = sphi 0, %s118
    %s133 = sphi 0, %s119
    %s139 = sphi 0, %s141
    %s142 = sphi 0, %s139
    %s143 = sphi 0, %s142
    %s159 = sphi 0, %s143
    %s165 = sphi 0, %s167
    %s168 = sphi 0, %s165
    %s169 = sphi 0, %s168
    %s185 = sphi 0, %s169
    %s191 = sphi 0, %s193
    %s194 = sphi 0, %s191
    %s195 = sphi 0, %s194
    %s211 = sphi 0, %s195
  $region4: #{m_forward.2} parent=0 // loop_header_branch
    %17 = sbr.rel (%p15) target = $region8
  $region5: #{m_forward.2} parent=0 // loop_body
    %s19 = ssub.s32 %s14, 1
    %s20 = ssub.s32 %s14, 2
    %s21 = sadd.s32 %s14, 1
    %s22 = ssub.s32 %s14, %s21
    %p23 = scmp.eq.s32.totalorder %s22, 0
    %s25 = sadd.s32 %s24, 1
    %s26 = scalar_select %p23, %s24, %s25
    %p29 = pneg %p23
    %p30 = scmp.eq.s32.totalorder %s14, 3
    %p31 = por %p29, %p30
    %p32 = scmp.ne.s32.totalorder %s24, %s27
    %p33 = scmp.eq.s32.totalorder %s14, 0
    %p34 = por %p32, %p33
    %p35 = scmp.ne.s32.totalorder %s24, %s27
    %p36 = scmp.eq.s32.totalorder %s19, 3
    %p37 = por %p35, %p36
    %p38 = scmp.ne.s32.totalorder %s27, %s28
    %p39 = scmp.eq.s32.totalorder %s19, 0
    %p40 = por %p38, %p39
    %p41 = scmp.ne.s32.totalorder %s27, %s28
    %p42 = scmp.eq.s32.totalorder %s20, 3
    %p43 = por %p41, %p42
    %p45 = scmp.ne.s32.totalorder %s28, %s44
    %p46 = scmp.eq.s32.totalorder %s20, 0
    %p47 = por %p45, %p46
    %s48 = ssub.s32 %s14, %s21
    %p49 = scmp.eq.s32.totalorder %s48, 0
    %s51 = sadd.s32 %s50, 1
    %s52 = scalar_select %p49, %s50, %s51
    %p55 = pneg %p49
    %p56 = scmp.eq.s32.totalorder %s14, 3
    %p57 = por %p55, %p56
    %p58 = scmp.ne.s32.totalorder %s50, %s53
    %p59 = scmp.eq.s32.totalorder %s14, 0
    %p60 = por %p58, %p59
    %p61 = scmp.ne.s32.totalorder %s50, %s53
    %p62 = scmp.eq.s32.totalorder %s19, 3
    %p63 = por %p61, %p62
    %p64 = scmp.ne.s32.totalorder %s53, %s54
    %p65 = scmp.eq.s32.totalorder %s19, 0
    %p66 = por %p64, %p65
    %p67 = scmp.ne.s32.totalorder %s53, %s54
    %p68 = scmp.eq.s32.totalorder %s20, 3
    %p69 = por %p67, %p68
    %p71 = scmp.ne.s32.totalorder %s54, %s70
    %p72 = scmp.eq.s32.totalorder %s20, 0
    %p73 = por %p71, %p72
    %s75 = sadd.s32 %s74, 1
    %p78 = scmp.eq.s32.totalorder %s14, 3
    %p79 = scmp.ne.s32.totalorder %s74, %s76
    %p80 = scmp.eq.s32.totalorder %s14, 0
    %p81 = por %p79, %p80
    %p82 = scmp.ne.s32.totalorder %s74, %s76
    %p83 = scmp.eq.s32.totalorder %s19, 3
    %p84 = por %p82, %p83
    %p85 = scmp.ne.s32.totalorder %s76, %s77
    %p86 = scmp.eq.s32.totalorder %s19, 0
    %p87 = por %p85, %p86
    %p88 = scmp.ne.s32.totalorder %s76, %s77
    %p89 = scmp.eq.s32.totalorder %s20, 3
    %p90 = por %p88, %p89
    %p92 = scmp.ne.s32.totalorder %s77, %s91
    %p93 = scmp.eq.s32.totalorder %s20, 0
    %p94 = por %p92, %p93
    %s96 = sadd.s32 %s95, 1
    %p99 = scmp.eq.s32.totalorder %s14, 3
    %p100 = scmp.ne.s32.totalorder %s95, %s97
    %p101 = scmp.eq.s32.totalorder %s14, 0
    %p102 = por %p100, %p101
    %p103 = scmp.ne.s32.totalorder %s95, %s97
    %p104 = scmp.eq.s32.totalorder %s19, 3
    %p105 = por %p103, %p104
    %p106 = scmp.ne.s32.totalorder %s97, %s98
    %p107 = scmp.eq.s32.totalorder %s19, 0
    %p108 = por %p106, %p107
    %p109 = scmp.ne.s32.totalorder %s97, %s98
    %p110 = scmp.eq.s32.totalorder %s20, 3
    %p111 = por %p109, %p110
    %p113 = scmp.ne.s32.totalorder %s98, %s112
    %p114 = scmp.eq.s32.totalorder %s20, 0
    %p115 = por %p113, %p114
    %s117 = sadd.s32 %s116, 1
    %p120 = scmp.eq.s32.totalorder %s14, 3
    %p121 = scmp.ne.s32.totalorder %s116, %s118
    %p122 = scmp.eq.s32.totalorder %s14, 0
    %p123 = por %p121, %p122
    %p124 = scmp.ne.s32.totalorder %s116, %s118
    %p125 = scmp.eq.s32.totalorder %s19, 3
    %p126 = por %p124, %p125
    %p127 = scmp.ne.s32.totalorder %s118, %s119
    %p128 = scmp.eq.s32.totalorder %s19, 0
    %p129 = por %p127, %p128
    %p130 = scmp.ne.s32.totalorder %s118, %s119
    %p131 = scmp.eq.s32.totalorder %s20, 3
    %p132 = por %p130, %p131
    %p134 = scmp.ne.s32.totalorder %s119, %s133
    %p135 = scmp.eq.s32.totalorder %s20, 0
    %p136 = por %p134, %p135
    %s137 = ssub.s32 %s14, %s21
    %p138 = scmp.eq.s32.totalorder %s137, 0
    %s140 = sadd.s32 %s139, 1
    %s141 = scalar_select %p138, %s139, %s140
    %p144 = pneg %p138
    %p145 = scmp.eq.s32.totalorder %s14, 3
    %p146 = por %p144, %p145
    %p147 = scmp.ne.s32.totalorder %s139, %s142
    %p148 = scmp.eq.s32.totalorder %s14, 0
    %p149 = por %p147, %p148
    %p150 = scmp.ne.s32.totalorder %s139, %s142
    %p151 = scmp.eq.s32.totalorder %s19, 3
    %p152 = por %p150, %p151
    %p153 = scmp.ne.s32.totalorder %s142, %s143
    %p154 = scmp.eq.s32.totalorder %s19, 0
    %p155 = por %p153, %p154
    %p156 = scmp.ne.s32.totalorder %s142, %s143
    %p157 = scmp.eq.s32.totalorder %s20, 3
    %p158 = por %p156, %p157
    %p160 = scmp.ne.s32.totalorder %s143, %s159
    %p161 = scmp.eq.s32.totalorder %s20, 0
    %p162 = por %p160, %p161
    %s163 = ssub.s32 %s14, %s21
    %p164 = scmp.eq.s32.totalorder %s163, 0
    %s166 = sadd.s32 %s165, 1
    %s167 = scalar_select %p164, %s165, %s166
    %p170 = pneg %p164
    %p171 = scmp.eq.s32.totalorder %s14, 3
    %p172 = por %p170, %p171
    %p173 = scmp.ne.s32.totalorder %s165, %s168
    %p174 = scmp.eq.s32.totalorder %s14, 0
    %p175 = por %p173, %p174
    %p176 = scmp.ne.s32.totalorder %s165, %s168
    %p177 = scmp.eq.s32.totalorder %s19, 3
    %p178 = por %p176, %p177
    %p179 = scmp.ne.s32.totalorder %s168, %s169
    %p180 = scmp.eq.s32.totalorder %s19, 0
    %p181 = por %p179, %p180
    %p182 = scmp.ne.s32.totalorder %s168, %s169
    %p183 = scmp.eq.s32.totalorder %s20, 3
    %p184 = por %p182, %p183
    %p186 = scmp.ne.s32.totalorder %s169, %s185
    %p187 = scmp.eq.s32.totalorder %s20, 0
    %p188 = por %p186, %p187
    %s189 = ssub.s32 %s14, %s21
    %p190 = scmp.eq.s32.totalorder %s189, 0
    %s192 = sadd.s32 %s191, 1
    %s193 = scalar_select %p190, %s191, %s192
    %p196 = pneg %p190
    %p197 = scmp.eq.s32.totalorder %s14, 3
    %p198 = por %p196, %p197
    %p199 = scmp.ne.s32.totalorder %s191, %s194
    %p200 = scmp.eq.s32.totalorder %s14, 0
    %p201 = por %p199, %p200
    %p202 = scmp.ne.s32.totalorder %s191, %s194
    %p203 = scmp.eq.s32.totalorder %s19, 3
    %p204 = por %p202, %p203
    %p205 = scmp.ne.s32.totalorder %s194, %s195
    %p206 = scmp.eq.s32.totalorder %s19, 0
    %p207 = por %p205, %p206
    %p208 = scmp.ne.s32.totalorder %s194, %s195
    %p209 = scmp.eq.s32.totalorder %s20, 3
    %p210 = por %p208, %p209
    %p212 = scmp.ne.s32.totalorder %s195, %s211
    %p213 = scmp.eq.s32.totalorder %s20, 0
    %p214 = por %p212, %p213
    %p215 = scmp.le.s32.totalorder 1, %s14
    %p216 = scmp.lt.s32.totalorder %s14, 5
    %p217 = pnand %p215, %p216
    %p218 = pneg %p217
    // Predicated region
    $region9: #{m_forward.2} parent=5 // pred_check
      _
    $region10: #{m_forward.2} parent=5 // pred_check_branch
      %220 = sbr.rel (%p217) target = $region12
    $region11: #{m_forward.2} parent=5 // pred_region
      %s221 = ssub.s32 %s14, 1
      // Predicated region
      $region13: #{m_forward.2} parent=11 // pred_check
        %p222 = pneg %p87
      $region14: #{m_forward.2} parent=11 // pred_check_branch
        %224 = sbr.rel (%p222) target = $region16
      $region15: #{m_forward.2} parent=11 // pred_region
        _
      $region16: #{m_forward.2} parent=11 // pred_fallthru
        _
      // Predicated region
      $region17: #{m_forward.2} parent=11 // pred_check
        %p225 = pneg %p108
      $region18: #{m_forward.2} parent=11 // pred_check_branch
        %227 = sbr.rel (%p225) target = $region20
      $region19: #{m_forward.2} parent=11 // pred_region
        _
      $region20: #{m_forward.2} parent=11 // pred_fallthru
        _
      // Predicated region
      $region21: #{m_forward.2} parent=11 // pred_check
        %p228 = pneg %p129
      $region22: #{m_forward.2} parent=11 // pred_check_branch
        %230 = sbr.rel (%p228) target = $region24
      $region23: #{m_forward.2} parent=11 // pred_region
        _
      $region24: #{m_forward.2} parent=11 // pred_fallthru
        _
    $region12: #{m_forward.2} parent=5 // pred_fallthru
      _
    %p231 = scmp.lt.s32.totalorder %s14, 4
    // Predicated region
    $region25: #{m_forward.2} parent=5 // pred_check
      %p232 = pneg %p231
    $region26: #{m_forward.2} parent=5 // pred_check_branch
      %234 = sbr.rel (%p232) target = $region28
    $region27: #{m_forward.2} parent=5 // pred_region
      // Predicated region
      $region29: #{m_forward.2} parent=27 // pred_check
        %p235 = pneg %p34
      $region30: #{m_forward.2} parent=27 // pred_check_branch
        %237 = sbr.rel (%p235) target = $region32
      $region31: #{m_forward.2} parent=27 // pred_region
        %s238 = smul.u32 4, %s14
        %p239 = scmp.lt.s32.totalorder %s238, 15
        %s240 = scalar_select %p239, %s238, 15
        %s241 = smul.addr %s240, 8
        %s242 = scalar_lea.vmem %s0, %s241
        %s243 = smul.u32 4, %s14
      $region32: #{m_forward.2} parent=27 // pred_fallthru
        _
      // Predicated region
      $region33: #{m_forward.2} parent=27 // pred_check
        %p244 = pneg %p60
      $region34: #{m_forward.2} parent=27 // pred_check_branch
        %246 = sbr.rel (%p244) target = $region36
      $region35: #{m_forward.2} parent=27 // pred_region
        %s247 = smul.u32 4, %s14
        %p248 = scmp.lt.s32.totalorder %s247, 15
        %s249 = scalar_select %p248, %s247, 15
        %s250 = smul.addr %s249, 8
        %s251 = scalar_lea.vmem %s1, %s250
        %s252 = smul.u32 4, %s14
      $region36: #{m_forward.2} parent=27 // pred_fallthru
        _
    $region28: #{m_forward.2} parent=5 // pred_fallthru
      _
    %p253 = scmp.le.s32.totalorder 1, %s14
    %p254 = scmp.lt.s32.totalorder %s14, 5
    %p255 = pnand %p253, %p254
    %p256 = pneg %p255
    // Predicated region
    $region37: #{m_forward.2} parent=5 // pred_check
      _
    $region38: #{m_forward.2} parent=5 // pred_check_branch
      %258 = sbr.rel (%p255) target = $region40
    $region39: #{m_forward.2} parent=5 // pred_region
      %s259 = ssub.s32 %s14, 1
      %s260 = smul.u32 4, %s19
      %p261 = scmp.lt.s32.totalorder %s260, 15
      %s262 = scalar_select %p261, %s260, 15
      %s263 = smul.addr %s262, 8
      %s264 = scalar_lea.vmem %s0, %s263
      %p265 = pneg %p40
      %p266 = pneg %p37
      %s267 = smul.u32 4, %s19
      %p268 = scmp.lt.s32.totalorder %s267, 15
      %s269 = scalar_select %p268, %s267, 15
      %s270 = smul.addr %s269, 8
      %s271 = scalar_lea.vmem %s1, %s270
      %p272 = pneg %p66
      %p273 = pneg %p63
      %p274 = pneg %p87
      %p275 = pneg %p84
      %p276 = pneg %p108
      %p277 = pneg %p105
      %p278 = pneg %p129
      %p279 = pneg %p126
      %p280 = pneg %p155
      %p281 = pneg %p152
      %s282 = smul.u32 4, %s19
      %p283 = scmp.lt.s32.totalorder %s282, 15
      %s284 = scalar_select %p283, %s282, 15
      %s285 = smul.addr %s284, 8
      %s286 = scalar_lea.vmem %s5, %s285
      %p287 = pneg %p181
      %p288 = pneg %p178
      %p289 = scmp.lt.s32.totalorder %s19, 3
      %s290 = scalar_select %p289, %s19, 3
      %s291 = smul.addr %s290, 8
      %s292 = scalar_lea.vmem %s6, %s291
      %p293 = pneg %p207
      %p294 = pneg %p204
      %p295 = scmp.lt.s32.totalorder %s19, 3
      %s296 = scalar_select %p295, %s19, 3
      %s297 = smul.addr %s296, 8
      %s298 = scalar_lea.vmem %s7, %s297
      %s299 = smul.u32 4, %s19
      %p300 = scmp.lt.s32.totalorder %s299, 15
      %s301 = scalar_select %p300, %s299, 15
      %s302 = smul.addr %s301, 8
      %s303 = scalar_lea.vmem %s0, %s302
      %s304 = smul.u32 4, %s19
      %s305 = smul.u32 4, %s19
      %p306 = scmp.lt.s32.totalorder %s305, 15
      %s307 = scalar_select %p306, %s305, 15
      %s308 = smul.addr %s307, 8
      %s309 = scalar_lea.vmem %s1, %s308
      %s310 = smul.u32 4, %s19
      %s311 = smul.u32 4, %s19
      %p312 = scmp.lt.s32.totalorder %s311, 15
      %s313 = scalar_select %p312, %s311, 15
      %s314 = smul.addr %s313, 8
      %s315 = scalar_lea.vmem %s5, %s314
      %s316 = smul.u32 4, %s19
      %p317 = scmp.lt.s32.totalorder %s19, 3
      %s318 = scalar_select %p317, %s19, 3
      %s319 = smul.addr %s318, 8
      %s320 = scalar_lea.vmem %s6, %s319
      %p321 = scmp.lt.s32.totalorder %s19, 3
      %s322 = scalar_select %p321, %s19, 3
      %s323 = smul.addr %s322, 8
      %s324 = scalar_lea.vmem %s7, %s323
      %v326 = vld [vmem:[%s303] sm:$0xff]
      %v327 = vld [vmem:[%s303 + $0x8] sm:$0xff]
      %v328 = vld [vmem:[%s303 + $0x10] sm:$0xff]
      %v329 = vld [vmem:[%s303 + $0x18] sm:$0xff]
      %v330 = vld [vmem:[%s2] sm:$0x1]
      %v332 = vlaneseq
      %v333 = vshrl.u32 %v332, 7
      %v334 = vsub.s32 0, %v333
      %v335 = vrot.slane %v330, %v334
      %v337 = vmul.f32 %v326, %v335
      %v338 = vmul.f32 %v327, %v335
      %v339 = vmul.f32 %v328, %v335
      %v340 = vmul.f32 %v329, %v335
      %v341 = vld [vmem:[%s3] sm:$0x1]
      %v343 = vlaneseq
      %v344 = vshrl.u32 %v343, 7
      %v345 = vsub.s32 0, %v344
      %v346 = vrot.slane %v341, %v345
      %v348 = vadd.f32 %v337, %v346
      %v349 = vadd.f32 %v338, %v346
      %v350 = vadd.f32 %v339, %v346
      %v351 = vadd.f32 %v340, %v346
      %v352 = vld [vmem:[%s309] sm:$0xff]
      %v353 = vld [vmem:[%s309 + $0x8] sm:$0xff]
      %v354 = vld [vmem:[%s309 + $0x10] sm:$0xff]
      %v355 = vld [vmem:[%s309 + $0x18] sm:$0xff]
      %v356 = vadd.f32 %v348, %v352
      %v357 = vadd.f32 %v349, %v353
      %v358 = vadd.f32 %v350, %v354
      %v359 = vadd.f32 %v351, %v355
      %v360 = vmax.f32 %v356, 0.0
      %v361 = vmax.f32 %v357, 0.0
      %v362 = vmax.f32 %v358, 0.0
      %v363 = vmax.f32 %v359, 0.0
      %v364 = vpack.c.bf16 %v361, %v360
      %v365 = vpack.c.bf16 %v363, %v362
      %v366 = vld [vmem:[%s4] sm:$0xf]
      %v367 = vld [vmem:[%s4 + $0x4] sm:$0xf]
      %v368 = vld [vmem:[%s4 + $0x8] sm:$0xf]
      %v369 = vld [vmem:[%s4 + $0xc] sm:$0xf]
      %v374 = vunpack.c.l.b16 %v366
      %v375 = vunpack.c.l.b16 %v367
      %v376 = vunpack.c.l.b16 %v368
      %v377 = vunpack.c.l.b16 %v369
      %v378 = vpack.c.b16 %v375, %v374
      %v379 = vpack.c.b16 %v377, %v376
      %vm382 = vcmask 261120
      %v384 = vsel %vm382, %v364, 0
      %v387 = vsel %vm382, %v365, 0
      %389 = vmatprep.subr.bf16.mxu0 0
      %390 = vmatpush1.bf16.msra.mxu0 %v378
      %391 = vmatprep.subr.bf16.mxu0 0
      %392 = vmatpush1.bf16.msra.mxu0 %v379
      %393 = vmatprep.subr.bf16.mxu0 0
      %394 = vmatpush1.bf16.msra.mxu0 0
      %395 = vmatprep.subr.bf16.mxu0 0
      %396 = vmatpush1.bf16.msra.mxu0 0
      %397 = vmatprep.subr.bf16.mxu0 0
      %398 = vmatpush1.bf16.msra.mxu0 0
      %399 = vmatprep.subr.bf16.mxu0 0
      %400 = vmatpush1.bf16.msra.mxu0 0
      %401 = vmatprep.subr.bf16.mxu0 0
      %402 = vmatpush1.bf16.msra.mxu0 0
      %403 = vmatprep.subr.bf16.mxu0 0
      %404 = vmatpush1.bf16.msra.mxu0 0
      %405 = vmatprep.subr.bf16.mxu0 0
      %406 = vmatpush1.bf16.msra.mxu0 0
      %407 = vmatprep.subr.bf16.mxu0 0
      %408 = vmatpush1.bf16.msra.mxu0 0
      %409 = vmatprep.subr.bf16.mxu0 0
      %410 = vmatpush1.bf16.msra.mxu0 0
      %411 = vmatprep.subr.bf16.mxu0 0
      %412 = vmatpush1.bf16.msra.mxu0 0
      %413 = vmatprep.subr.bf16.mxu0 0
      %414 = vmatpush1.bf16.msra.mxu0 0
      %415 = vmatprep.subr.bf16.mxu0 0
      %416 = vmatpush1.bf16.msra.mxu0 0
      %417 = vmatprep.subr.bf16.mxu0 0
      %418 = vmatpush1.bf16.msra.mxu0 0
      %419 = vmatprep.subr.bf16.mxu0 0
      %420 = vmatpush1.bf16.msra.mxu0 0
      %421 = vmatprep.mubr.bf16.mxu0 0
      %422 = vmatmul.mubr.bf16.gmra.mrb[0].mxu0 %v384
      %v423 = vpop.f32.mrb[0].mxu0
      %v424 = vadd.f32 0.0, %v423
      %v425 = vpop.f32.mrb[0].mxu0
      %v426 = vpop.f32.mrb[0].mxu0
      %v427 = vadd.f32 0.0, %v426
      %v428 = vpop.f32.mrb[0].mxu0
      %429 = vmatprep.mubr.bf16.mxu0 0
      %430 = vmatmul.mubr.bf16.gmra.mrb[0].mxu0 %v387
      %v431 = vpop.f32.mrb[0].mxu0
      %v432 = vadd.f32 0.0, %v431
      %v433 = vpop.f32.mrb[0].mxu0
      %v434 = vpop.f32.mrb[0].mxu0
      %v435 = vadd.f32 0.0, %v434
      %v436 = vpop.f32.mrb[0].mxu0
      %437 = vdwg.mxu0
      %vm438 = vcmask 130048
      %439 = vst.msk [vmem:[%s315] sm:$0xff] %vm438, %v424
      %440 = vst.msk [vmem:[%s315 + $0x8] sm:$0xff] %vm438, %v427
      %441 = vst.msk [vmem:[%s315 + $0x10] sm:$0xff] %vm438, %v432
      %442 = vst.msk [vmem:[%s315 + $0x18] sm:$0xff] %vm438, %v435
      %s443 = smul.u32 %s19, 32
      %v444 = vlaneseq
      %v445 = vshrl.u32 %v444, 7
      %v446 = vadd.s32 %v445, 8
      %v447 = vadd.s32 %v445, 16
      %v448 = vadd.s32 %v445, 24
      %v449 = vstv %s443
      %v450 = vadd.s32 %v449, %v445
      %v451 = vadd.s32 %v449, %v446
      %v452 = vadd.s32 %v449, %v447
      %v453 = vadd.s32 %v449, %v448
      %vm454 = vcmp.lt.s32.totalorder %v450, 98
      %vm455 = vcmp.lt.s32.totalorder %v451, 98
      %vm456 = vcmp.lt.s32.totalorder %v452, 98
      %vm457 = vcmp.lt.s32.totalorder %v453, 98
      %v458 = vsel %vm454, 1, 0
      %v459 = vsel %vm455, 1, 0
      %v460 = vsel %vm456, 1, 0
      %v461 = vsel %vm457, 1, 0
      %vm462 = vcmp.eq.s32.totalorder %v458, 1
      %vm463 = vcmp.eq.s32.totalorder %v459, 1
      %vm464 = vcmp.eq.s32.totalorder %v460, 1
      %vm465 = vcmp.eq.s32.totalorder %v461, 1
      %v466 = vsel %vm462, %v424, 0.0
      %v467 = vsel %vm463, %v427, 0.0
      %v468 = vsel %vm464, %v432, 0.0
      %v469 = vsel %vm465, %v435, 0.0
      %v470 = vsel %vm438, %v466, 0.0
      %v471 = vsel %vm438, %v467, 0.0
      %v472 = vadd.f32 %v470, %v471
      %v473 = vsel %vm438, %v468, 0.0
      %v474 = vadd.f32 %v472, %v473
      %v475 = vsel %vm438, %v469, 0.0
      %v476 = vadd.f32 %v474, %v475
      %v477 = vrot.slane %v476, 4
      %v478 = vadd.f32 %v476, %v477
      %v479 = vrot.slane %v478, 2
      %v480 = vadd.f32 %v478, %v479
      %v481 = vrot.slane %v480, 1
      %v482 = vadd.f32 %v480, %v481
      %v483 = vmul.f32 %v466, %v466
      %v484 = vmul.f32 %v467, %v467
      %v485 = vmul.f32 %v468, %v468
      %v486 = vmul.f32 %v469, %v469
      %v487 = vsel %vm438, %v483, 0.0
      %v488 = vsel %vm438, %v484, 0.0
      %v489 = vadd.f32 %v487, %v488
      %v490 = vsel %vm438, %v485, 0.0
      %v491 = vadd.f32 %v489, %v490
      %v492 = vsel %vm438, %v486, 0.0
      %v493 = vadd.f32 %v491, %v492
      %v494 = vrot.slane %v493, 4
      %v495 = vadd.f32 %v493, %v494
      %v496 = vrot.slane %v495, 2
      %v497 = vadd.f32 %v495, %v496
      %v498 = vrot.slane %v497, 1
      %v499 = vadd.f32 %v497, %v498
      %500 = vst.msk [vmem:[%s320] sm:$0xff] %vm438, %v482
      %501 = vst.msk [vmem:[%s324] sm:$0xff] %vm438, %v499
      %s502 = smul.u32 4, %s19
      %p503 = scmp.lt.s32.totalorder %s502, 15
      %s504 = scalar_select %p503, %s502, 15
      %s505 = smul.addr %s504, 8
      %s506 = scalar_lea.vmem %s5, %s505
      %p507 = scmp.lt.s32.totalorder %s19, 3
      %s508 = scalar_select %p507, %s19, 3
      %s509 = smul.addr %s508, 8
      %s510 = scalar_lea.vmem %s6, %s509
      %p511 = scmp.lt.s32.totalorder %s19, 3
      %s512 = scalar_select %p511, %s19, 3
      %s513 = smul.addr %s512, 8
      %s514 = scalar_lea.vmem %s7, %s513
      // Predicated region
      $region41: #{m_forward.2} parent=39 // pred_check
        %p515 = pneg %p152
      $region42: #{m_forward.2} parent=39 // pred_check_branch
        %517 = sbr.rel (%p515) target = $region44
      $region43: #{m_forward.2} parent=39 // pred_region
        %s518 = smul.u32 4, %s19
      $region44: #{m_forward.2} parent=39 // pred_fallthru
        _
      // Predicated region
      $region45: #{m_forward.2} parent=39 // pred_check
        %p519 = pneg %p178
      $region46: #{m_forward.2} parent=39 // pred_check_branch
        %521 = sbr.rel (%p519) target = $region48
      $region47: #{m_forward.2} parent=39 // pred_region
        _
      $region48: #{m_forward.2} parent=39 // pred_fallthru
        _
      // Predicated region
      $region49: #{m_forward.2} parent=39 // pred_check
        %p522 = pneg %p204
      $region50: #{m_forward.2} parent=39 // pred_check_branch
        %524 = sbr.rel (%p522) target = $region52
      $region51: #{m_forward.2} parent=39 // pred_region
        _
      $region52: #{m_forward.2} parent=39 // pred_fallthru
        _
    $region40: #{m_forward.2} parent=5 // pred_fallthru
      _
    %p525 = scmp.le.s32.totalorder 2, %s14
    // Predicated region
    $region53: #{m_forward.2} parent=5 // pred_check
      %p526 = pneg %p525
    $region54: #{m_forward.2} parent=5 // pred_check_branch
      %528 = sbr.rel (%p526) target = $region56
    $region55: #{m_forward.2} parent=5 // pred_region
      %s529 = ssub.s32 %s14, 2
      // Predicated region
      $region57: #{m_forward.2} parent=55 // pred_check
        %p530 = pneg %p158
      $region58: #{m_forward.2} parent=55 // pred_check_branch
        %532 = sbr.rel (%p530) target = $region60
      $region59: #{m_forward.2} parent=55 // pred_region
        %s533 = smul.u32 4, %s20
        %p534 = scmp.lt.s32.totalorder %s533, 15
        %s535 = scalar_select %p534, %s533, 15
        %s536 = smul.addr %s535, 8
        %s537 = scalar_lea.vmem %s5, %s536
      $region60: #{m_forward.2} parent=55 // pred_fallthru
        _
      // Predicated region
      $region61: #{m_forward.2} parent=55 // pred_check
        %p538 = pneg %p184
      $region62: #{m_forward.2} parent=55 // pred_check_branch
        %540 = sbr.rel (%p538) target = $region64
      $region63: #{m_forward.2} parent=55 // pred_region
        %p541 = scmp.lt.s32.totalorder %s20, 3
        %s542 = scalar_select %p541, %s20, 3
        %s543 = smul.addr %s542, 8
        %s544 = scalar_lea.vmem %s6, %s543
      $region64: #{m_forward.2} parent=55 // pred_fallthru
        _
      // Predicated region
      $region65: #{m_forward.2} parent=55 // pred_check
        %p545 = pneg %p210
      $region66: #{m_forward.2} parent=55 // pred_check_branch
        %547 = sbr.rel (%p545) target = $region68
      $region67: #{m_forward.2} parent=55 // pred_region
        %p548 = scmp.lt.s32.totalorder %s20, 3
        %s549 = scalar_select %p548, %s20, 3
        %s550 = smul.addr %s549, 8
        %s551 = scalar_lea.vmem %s7, %s550
      $region68: #{m_forward.2} parent=55 // pred_fallthru
        _
    $region56: #{m_forward.2} parent=5 // pred_fallthru
      _
  $region6: #{m_forward.2} parent=0 // loop_footer
    %s18 = sadd.s32 1, %s14
  $region7: #{m_forward.2} parent=0 // loop_footer_branch
    %13 = sbr.rel target = $region3
  $region8: #{m_forward.2} parent=0 // loop_exit
    _

</llo_original>
